<compile_context>
chip_gen: v5e
topology: v5e:2x2
jax: 0.10.0
libtpu: 0.0.40
codegen_flags: <defaults>
</compile_context>

<pallas_src>
import jax
import jax.numpy as jnp
from jax import lax
from jax.experimental import pallas as pl
from jax.experimental.pallas import tpu as pltpu


def _qknorm_kernel(q_ref, k_ref, qs_ref, ks_ref, qo_ref, ko_ref):
    """RMSNorm(q) and RMSNorm(k) for one tile of rows."""

    def rms_norm(x_ref, s_ref, o_ref):
        x32 = x_ref[...].astype(jnp.float32)
        ms = jnp.mean(x32 * x32, axis=-1, keepdims=True)
        rrms = lax.rsqrt(ms + 1e-6)
        # Truncate back to the input dtype first, then multiply by the f32
        # scale (exactly what the PyTorch module does), then cast to v.dtype.
        y = (x32 * rrms).astype(x_ref.dtype) * s_ref[...]  # scales already f32
        o_ref[...] = y.astype(o_ref.dtype)

    rms_norm(q_ref, qs_ref, qo_ref)
    rms_norm(k_ref, ks_ref, ko_ref)


def _round_up(x, m):
    return ((x + m - 1) // m) * m


def qknorm(q, k, v, query_scale, key_scale, *, row_tile=1024):
    """Apply QKNorm.  q, k: [..., D]; returns (q_norm, k_norm) in v.dtype.

    Accepts any input dtype (bf16 preferred: halves HBM read traffic for this
    memory-bound kernel); the reduction is always done in f32 in-kernel.
    """
    assert q.shape == k.shape, "q and k must share a shape for this kernel"
    D = q.shape[-1]
    rows = 1
    for s in q.shape[:-1]:
        rows *= s

    # NOTE: flux head_dim is 128, so the output last dim is lane-dense.
    # TODO(synk): if D < 128, fold groups of 128//D rows into the lane axis to
    # avoid masked partial stores; not needed for flux (D == 128).

    q2 = q.reshape(rows, D)
    k2 = k.reshape(rows, D)
    qs = query_scale.reshape(1, D).astype(jnp.float32)
    ks = key_scale.reshape(1, D).astype(jnp.float32)

    # Effective row tile: multiple of 8, no larger than the (padded) row count.
    tile = _round_up(min(row_tile, _round_up(rows, 8)), 8)
    padded_rows = _round_up(rows, tile)
    if padded_rows != rows:
        pad = padded_rows - rows
        # Zero-padded tail rows are harmless (rsqrt(0 + 1e-6) * 0 == 0) and
        # sliced off below.
        q2 = jnp.pad(q2, ((0, pad), (0, 0)))
        k2 = jnp.pad(k2, ((0, pad), (0, 0)))

    grid = (padded_rows // tile,)
    row_spec = pl.BlockSpec((tile, D), lambda i: (i, 0))
    scale_spec = pl.BlockSpec((1, D), lambda i: (0, 0))

    qo, ko = pl.pallas_call(
        _qknorm_kernel,
        out_shape=(
            jax.ShapeDtypeStruct((padded_rows, D), v.dtype),
            jax.ShapeDtypeStruct((padded_rows, D), v.dtype),
        ),
        grid=grid,
        in_specs=[row_spec, row_spec, scale_spec, scale_spec],
        out_specs=(row_spec, row_spec),
        compiler_params=pltpu.CompilerParams(
            # 1-D parallel row axis: sharded across the 2 TensorCores on v7x,
            # no-op (but harmless) on v5e/v6e.
            dimension_semantics=("parallel",),
            # Plenty of headroom for the ~2-3 MiB double-buffered working set;
            # above v5e's 16 MiB default, well under v7x's 64 MiB physical.
            vmem_limit_bytes=32 * 1024 * 1024,
        ),
    )(q2, k2, qs, ks)

    if padded_rows != rows:
        qo = qo[:rows]
        ko = ko[:rows]
    return qo.reshape(q.shape), ko.reshape(k.shape)


def _reference_qknorm(q, k, v, query_scale, key_scale):
    def rms(x, scale):
        x32 = x.astype(jnp.float32)
        rrms = lax.rsqrt(jnp.mean(x32 * x32, axis=-1, keepdims=True) + 1e-6)
        return (x32 * rrms).astype(x.dtype) * scale.astype(jnp.float32)

    return (rms(q, query_scale).astype(v.dtype),
            rms(k, key_scale).astype(v.dtype))


if __name__ == "__main__":
    # Small shapes consistent with flux attention: head_dim D = 128.
    B, H, L, D = 2, 4, 8, 128

    key = jax.random.PRNGKey(0)
    kq, kk, kv = jax.random.split(key, 3)
    q = jax.random.normal(kq, (B, H, L, D), dtype=jnp.float32).astype(jnp.bfloat16)
    k = jax.random.normal(kk, (B, H, L, D), dtype=jnp.float32).astype(jnp.bfloat16)
    v = jax.random.normal(kv, (B, H, L, D), dtype=jnp.float32).astype(jnp.bfloat16)

    # Parameters: RMSNorm scales initialized to ones (nn.Parameter(torch.ones(dim))).
    query_scale = jnp.ones((D,), dtype=jnp.float32)
    key_scale = jnp.ones((D,), dtype=jnp.float32)

    q_out, k_out = qknorm(q, k, v, query_scale, key_scale)
    jax.block_until_ready((q_out, k_out))

    q_ref, k_ref = _reference_qknorm(q, k, v, query_scale, key_scale)
    assert q_out.dtype == v.dtype and k_out.dtype == v.dtype
    assert q_out.shape == q.shape and k_out.shape == k.shape
    assert jnp.allclose(q_out.astype(jnp.float32), q_ref.astype(jnp.float32),
                        atol=2e-2, rtol=2e-2)
    assert jnp.allclose(k_out.astype(jnp.float32), k_ref.astype(jnp.float32),
                        atol=2e-2, rtol=2e-2)

    print("KERNEL_OK")
</pallas_src>

<mosaic_0001>
module attributes {stable_mosaic.version = 11 : i64} {
  func.func @_qknorm_kernel(%arg0: i32, %arg1: memref<64x128xbf16, #tpu.memory_space<vmem>>, %arg2: memref<64x128xbf16, #tpu.memory_space<vmem>>, %arg3: memref<1x128xf32, #tpu.memory_space<vmem>>, %arg4: memref<1x128xf32, #tpu.memory_space<vmem>>, %arg5: memref<64x128xbf16, #tpu.memory_space<vmem>>, %arg6: memref<64x128xbf16, #tpu.memory_space<vmem>>) attributes {dimension_semantics = [#tpu.dimension_semantics<parallel>], iteration_bounds = array<i64: 1>, scalar_prefetch = 0 : i64, scratch_operands = 0 : i64, tpu.core_type = #tpu.core_type<tc>, window_params = [{transform_indices = @transform_0, window_bounds = array<i64: 64, 128>}, {transform_indices = @transform_1, window_bounds = array<i64: 64, 128>}, {pipeline_mode = #tpu.pipeline_mode<synchronous>, transform_indices = @transform_2, window_bounds = array<i64: 1, 128>}, {pipeline_mode = #tpu.pipeline_mode<synchronous>, transform_indices = @transform_3, window_bounds = array<i64: 1, 128>}, {transform_indices = @transform_4, window_bounds = array<i64: 64, 128>}, {transform_indices = @transform_5, window_bounds = array<i64: 64, 128>}]} {
    %c0 = arith.constant 0 : index
    %c0_0 = arith.constant 0 : index
    %0 = vector.load %arg1[%c0, %c0_0] : memref<64x128xbf16, #tpu.memory_space<vmem>>, vector<64x128xbf16>
    %1 = arith.extf %0 : vector<64x128xbf16> to vector<64x128xf32>
    %2 = arith.mulf %1, %1 : vector<64x128xf32>
    %cst = arith.constant dense<0.000000e+00> : vector<64xf32>
    %3 = vector.multi_reduction <add>, %2, %cst [1] : vector<64x128xf32> to vector<64xf32>
    %4 = vector.shape_cast %3 : vector<64xf32> to vector<64x1xf32>
    %cst_1 = arith.constant 1.280000e+02 : f32
    %5 = vector.broadcast %cst_1 : f32 to vector<64x1xf32>
    %6 = arith.divf %4, %5 : vector<64x1xf32>
    %cst_2 = arith.constant 9.99999997E-7 : f32
    %7 = vector.broadcast %cst_2 : f32 to vector<64x1xf32>
    %8 = arith.addf %6, %7 : vector<64x1xf32>
    %9 = math.rsqrt %8 : vector<64x1xf32>
    %10 = vector.broadcast %9 : vector<64x1xf32> to vector<64x128xf32>
    %11 = arith.mulf %1, %10 : vector<64x128xf32>
    %12 = arith.truncf %11 : vector<64x128xf32> to vector<64x128xbf16>
    %c0_3 = arith.constant 0 : index
    %c0_4 = arith.constant 0 : index
    %13 = vector.load %arg3[%c0_3, %c0_4] : memref<1x128xf32, #tpu.memory_space<vmem>>, vector<1x128xf32>
    %14 = arith.extf %12 : vector<64x128xbf16> to vector<64x128xf32>
    %15 = vector.broadcast %13 : vector<1x128xf32> to vector<64x128xf32>
    %16 = arith.mulf %14, %15 : vector<64x128xf32>
    %17 = arith.truncf %16 : vector<64x128xf32> to vector<64x128xbf16>
    %c0_5 = arith.constant 0 : index
    %c0_6 = arith.constant 0 : index
    %18 = vector.load %arg5[%c0_5, %c0_6] : memref<64x128xbf16, #tpu.memory_space<vmem>>, vector<64x128xbf16>
    tpu.vector_store %arg5[%c0_5, %c0_6], %17 {strides = array<i32>} : memref<64x128xbf16, #tpu.memory_space<vmem>>, vector<64x128xbf16>,
    %c0_7 = arith.constant 0 : index
    %c0_8 = arith.constant 0 : index
    %19 = vector.load %arg2[%c0_7, %c0_8] : memref<64x128xbf16, #tpu.memory_space<vmem>>, vector<64x128xbf16>
    %20 = arith.extf %19 : vector<64x128xbf16> to vector<64x128xf32>
    %21 = arith.mulf %20, %20 : vector<64x128xf32>
    %cst_9 = arith.constant dense<0.000000e+00> : vector<64xf32>
    %22 = vector.multi_reduction <add>, %21, %cst_9 [1] : vector<64x128xf32> to vector<64xf32>
    %23 = vector.shape_cast %22 : vector<64xf32> to vector<64x1xf32>
    %cst_10 = arith.constant 1.280000e+02 : f32
    %24 = vector.broadcast %cst_10 : f32 to vector<64x1xf32>
    %25 = arith.divf %23, %24 : vector<64x1xf32>
    %cst_11 = arith.constant 9.99999997E-7 : f32
    %26 = vector.broadcast %cst_11 : f32 to vector<64x1xf32>
    %27 = arith.addf %25, %26 : vector<64x1xf32>
    %28 = math.rsqrt %27 : vector<64x1xf32>
    %29 = vector.broadcast %28 : vector<64x1xf32> to vector<64x128xf32>
    %30 = arith.mulf %20, %29 : vector<64x128xf32>
    %31 = arith.truncf %30 : vector<64x128xf32> to vector<64x128xbf16>
    %c0_12 = arith.constant 0 : index
    %c0_13 = arith.constant 0 : index
    %32 = vector.load %arg4[%c0_12, %c0_13] : memref<1x128xf32, #tpu.memory_space<vmem>>, vector<1x128xf32>
    %33 = arith.extf %31 : vector<64x128xbf16> to vector<64x128xf32>
    %34 = vector.broadcast %32 : vector<1x128xf32> to vector<64x128xf32>
    %35 = arith.mulf %33, %34 : vector<64x128xf32>
    %36 = arith.truncf %35 : vector<64x128xf32> to vector<64x128xbf16>
    %c0_14 = arith.constant 0 : index
    %c0_15 = arith.constant 0 : index
    %37 = vector.load %arg6[%c0_14, %c0_15] : memref<64x128xbf16, #tpu.memory_space<vmem>>, vector<64x128xbf16>
    tpu.vector_store %arg6[%c0_14, %c0_15], %36 {strides = array<i32>} : memref<64x128xbf16, #tpu.memory_space<vmem>>, vector<64x128xbf16>,
    return
  }
  func.func @transform_0(%arg0: i32) -> (i32, i32) {
    %c0_i32 = arith.constant 0 : i32
    %c0_i32_0 = arith.constant 0 : i32
    return %arg0, %c0_i32 : i32, i32
  }
  func.func @transform_1(%arg0: i32) -> (i32, i32) {
    %c0_i32 = arith.constant 0 : i32
    %c0_i32_0 = arith.constant 0 : i32
    return %arg0, %c0_i32 : i32, i32
  }
  func.func @transform_2(%arg0: i32) -> (i32, i32) {
    %c0_i32 = arith.constant 0 : i32
    %c0_i32_0 = arith.constant 0 : i32
    %c0_i32_1 = arith.constant 0 : i32
    return %c0_i32, %c0_i32_0 : i32, i32
  }
  func.func @transform_3(%arg0: i32) -> (i32, i32) {
    %c0_i32 = arith.constant 0 : i32
    %c0_i32_0 = arith.constant 0 : i32
    %c0_i32_1 = arith.constant 0 : i32
    return %c0_i32, %c0_i32_0 : i32, i32
  }
  func.func @transform_4(%arg0: i32) -> (i32, i32) {
    %c0_i32 = arith.constant 0 : i32
    %c0_i32_0 = arith.constant 0 : i32
    return %arg0, %c0_i32 : i32, i32
  }
  func.func @transform_5(%arg0: i32) -> (i32, i32) {
    %c0_i32 = arith.constant 0 : i32
    %c0_i32_0 = arith.constant 0 : i32
    return %arg0, %c0_i32 : i32, i32
  }
}

</mosaic_0001>

<llo_original>
// kernel: tpu_custom_call.1
$region0: #{tpu_custom_call.1}
  #allocation0 [shape = 'u32[]', space=smem, size = 0x4, offset = 0x4, fixed_abs, tag = 'smem constant byte address 0x4 - core index']
  #allocation1 [shape = 'u32[72,128]{1,0:T(1,128)}', space=vmem, size = 0x9000, scoped, tag = 'internal scratch']
  %s0 = inlined_call_operand.hbm [shape: bf16[64,128], index: 0, kind: input, shape index: {}]
  %s1 = inlined_call_operand.hbm [shape: bf16[64,128], index: 1, kind: input, shape index: {}]
  %s2 = inlined_call_operand.vmem [shape: f32[1,128], index: 2, kind: input, shape index: {}]
  %s3 = inlined_call_operand.vmem [shape: f32[1,128], index: 3, kind: input, shape index: {}]
  %s4 = inlined_call_operand.hbm [shape: bf16[64,128], index: 4, kind: output, shape index: {0}]
  %s5 = inlined_call_operand.hbm [shape: bf16[64,128], index: 5, kind: output, shape index: {1}]
  %6 = xla_tuple %s4, %s5
  %s7 = sld [smem:[#allocation0]]
  $region42: #{tpu_custom_call.1} parent=0
    _
  %s9 = ssub.s32 1, %s7
  %s10 = scalar_select 0, %s9, %s7
  $region1: #{tpu_custom_call.1} parent=0
    #allocation2 [shape = 'u8[16384]{0}', space=vmem, size = 0x4000, scoped, tag = 'input window, operand 0, single buffered']
    #allocation3 [shape = 's32[1]{0}', space=sflag, size = 0x4, scoped, tag = 'scoped memory for tpu_custom_call.1']
    #allocation4 [shape = 's32[1]{0}', space=sflag, size = 0x4, scoped, tag = 'scoped memory for tpu_custom_call.1']
    #allocation5 [shape = 'u8[16384]{0}', space=vmem, size = 0x4000, scoped, tag = 'input window, operand 1, single buffered']
    #allocation6 [shape = 's32[1]{0}', space=sflag, size = 0x4, scoped, tag = 'scoped memory for tpu_custom_call.1']
    #allocation7 [shape = 'u8[16384]{0}', space=vmem, size = 0x4000, scoped, tag = 'output window, operand 0, single buffered']
    #allocation8 [shape = 'u8[16384]{0}', space=vmem, size = 0x4000, scoped, tag = 'output window, operand 1, single buffered']
    #allocation9 [shape = 's32[1]{0}', space=sflag, size = 0x4, scoped, tag = 'scoped memory for tpu_custom_call.1']
    %11 = vsyncpa [#allocation3], 0
    %12 = vsyncpa [#allocation6], 0
    %13 = vsyncpa [#allocation4], 0
    %14 = vsyncpa [#allocation9], 0
    // Predicated region
    $region2: #{tpu_custom_call.1} parent=1 // pred_check
      _
    $region3: #{tpu_custom_call.1} parent=1 // pred_check_branch
      %16 = sbr.rel (0) target = $region5
    $region4: #{tpu_custom_call.1} parent=1 // pred_region
      %18 = vsyncadd [#allocation3], 0
      %s19 = sshll.u32 %s0, 4
      %s20 = int_to_ptr.hbm [resolvable:$true] %s19
      %s21 = sshll.u32 [#allocation2], 4
      %s22 = int_to_ptr.vmem [resolvable:$true] %s21
      %27 = dma.hbm_to_vmem [thread:$0]  %s20, 512, %s22, [#allocation3], 64, 64, 4
    $region5: #{tpu_custom_call.1} parent=1 // pred_fallthru
      _
    // Predicated region
    $region6: #{tpu_custom_call.1} parent=1 // pred_check
      _
    $region7: #{tpu_custom_call.1} parent=1 // pred_check_branch
      %29 = sbr.rel (0) target = $region9
    $region8: #{tpu_custom_call.1} parent=1 // pred_region
      %31 = vsyncadd [#allocation6], 0
      %s32 = sshll.u32 %s1, 4
      %s33 = int_to_ptr.hbm [resolvable:$true] %s32
      %s34 = sshll.u32 [#allocation5], 4
      %s35 = int_to_ptr.vmem [resolvable:$true] %s34
      %40 = dma.hbm_to_vmem [thread:$0]  %s33, 512, %s35, [#allocation6], 64, 64, 4
    $region9: #{tpu_custom_call.1} parent=1 // pred_fallthru
      _
    // Predicated region
    $region10: #{tpu_custom_call.1} parent=1 // pred_check
      _
    $region11: #{tpu_custom_call.1} parent=1 // pred_check_branch
      %42 = sbr.rel (0) target = $region13
    $region12: #{tpu_custom_call.1} parent=1 // pred_region
      _
    $region13: #{tpu_custom_call.1} parent=1 // pred_fallthru
      _
    // Predicated region
    $region14: #{tpu_custom_call.1} parent=1 // pred_check
      _
    $region15: #{tpu_custom_call.1} parent=1 // pred_check_branch
      %44 = sbr.rel (0) target = $region17
    $region16: #{tpu_custom_call.1} parent=1 // pred_region
      _
    $region17: #{tpu_custom_call.1} parent=1 // pred_fallthru
      _
    // Predicated region
    $region18: #{tpu_custom_call.1} parent=1 // pred_check
      _
    $region19: #{tpu_custom_call.1} parent=1 // pred_check_branch
      %46 = sbr.rel (0) target = $region21
    $region20: #{tpu_custom_call.1} parent=1 // pred_region
      %48 = dma.done [#allocation3], 512
    $region21: #{tpu_custom_call.1} parent=1 // pred_fallthru
      _
    // Predicated region
    $region22: #{tpu_custom_call.1} parent=1 // pred_check
      _
    $region23: #{tpu_custom_call.1} parent=1 // pred_check_branch
      %50 = sbr.rel (0) target = $region25
    $region24: #{tpu_custom_call.1} parent=1 // pred_region
      %52 = dma.done [#allocation6], 512
    $region25: #{tpu_custom_call.1} parent=1 // pred_fallthru
      _
    %v53 = vld [vmem:[#allocation2] sm:$0xf]
    %v54 = vld [vmem:[#allocation2 + $0x4] sm:$0xf]
    %v55 = vld [vmem:[#allocation2 + $0x8] sm:$0xf]
    %v56 = vld [vmem:[#allocation2 + $0xc] sm:$0xf]
    %v57 = vld [vmem:[#allocation2 + $0x10] sm:$0xf]
    %v58 = vld [vmem:[#allocation2 + $0x14] sm:$0xf]
    %v59 = vld [vmem:[#allocation2 + $0x18] sm:$0xf]
    %v60 = vld [vmem:[#allocation2 + $0x1c] sm:$0xf]
    %v61 = vunpack.c.l.bf16 %v53
    %v62 = vunpack.c.l.bf16 %v54
    %v63 = vunpack.c.l.bf16 %v55
    %v64 = vunpack.c.l.bf16 %v56
    %v65 = vunpack.c.l.bf16 %v57
    %v66 = vunpack.c.l.bf16 %v58
    %v67 = vunpack.c.l.bf16 %v59
    %v68 = vunpack.c.l.bf16 %v60
    %v69 = vmul.f32 %v61, %v61
    %v70 = vmul.f32 %v62, %v62
    %v71 = vmul.f32 %v63, %v63
    %v72 = vmul.f32 %v64, %v64
    %v73 = vmul.f32 %v65, %v65
    %v74 = vmul.f32 %v66, %v66
    %v75 = vmul.f32 %v67, %v67
    %v76 = vmul.f32 %v68, %v68
    %77 = vadd.xlane.f32.xlu0 %v69
    %v78 = vpop.xlane.xlu0 %77
    %79 = vadd.xlane.f32.xlu0 %v70
    %v80 = vpop.xlane.xlu0 %79
    %81 = vadd.xlane.f32.xlu0 %v71
    %v82 = vpop.xlane.xlu0 %81
    %83 = vadd.xlane.f32.xlu0 %v72
    %v84 = vpop.xlane.xlu0 %83
    %85 = vadd.xlane.f32.xlu0 %v73
    %v86 = vpop.xlane.xlu0 %85
    %87 = vadd.xlane.f32.xlu0 %v74
    %v88 = vpop.xlane.xlu0 %87
    %89 = vadd.xlane.f32.xlu0 %v75
    %v90 = vpop.xlane.xlu0 %89
    %91 = vadd.xlane.f32.xlu0 %v76
    %v92 = vpop.xlane.xlu0 %91
    %v93 = vrcp.pop 128.0
    %v94 = vmul.f32 128.0, %v93
    %v95 = vsub.f32 1.0, %v94
    %v96 = vmul.f32 %v93, %v95
    %v97 = vadd.f32 %v93, %v96
    %vm98 = vweird.f32 %v93
    %v99 = vsel %vm98, %v93, %v97
    %v100 = vmul.f32 %v78, %v99
    %v101 = vmul.f32 %v80, %v99
    %v102 = vmul.f32 %v82, %v99
    %v103 = vmul.f32 %v84, %v99
    %v104 = vmul.f32 %v86, %v99
    %v105 = vmul.f32 %v88, %v99
    %v106 = vmul.f32 %v90, %v99
    %v107 = vmul.f32 %v92, %v99
    %v108 = vadd.f32 %v100, 1e-06
    %v109 = vadd.f32 %v101, 1e-06
    %v110 = vadd.f32 %v102, 1e-06
    %v111 = vadd.f32 %v103, 1e-06
    %v112 = vadd.f32 %v104, 1e-06
    %v113 = vadd.f32 %v105, 1e-06
    %v114 = vadd.f32 %v106, 1e-06
    %v115 = vadd.f32 %v107, 1e-06
    %v116 = vrsqrt.pop %v108
    %v117 = vmul.f32 %v116, %v108
    %v118 = vmul.f32 %v117, %v116
    %v119 = vmul.f32 0.5, %v118
    %v120 = vsub.f32 1.5, %v119
    %v121 = vmul.f32 %v116, %v120
    %vm122 = vweird.f32 %v108
    %vm123 = vweird.f32 %v116
    %vm124 = vmor %vm122, %vm123
    %v125 = vsel %vm124, %v116, %v121
    %v126 = vrsqrt.pop %v109
    %v127 = vmul.f32 %v126, %v109
    %v128 = vmul.f32 %v127, %v126
    %v129 = vmul.f32 0.5, %v128
    %v130 = vsub.f32 1.5, %v129
    %v131 = vmul.f32 %v126, %v130
    %vm132 = vweird.f32 %v109
    %vm133 = vweird.f32 %v126
    %vm134 = vmor %vm132, %vm133
    %v135 = vsel %vm134, %v126, %v131
    %v136 = vrsqrt.pop %v110
    %v137 = vmul.f32 %v136, %v110
    %v138 = vmul.f32 %v137, %v136
    %v139 = vmul.f32 0.5, %v138
    %v140 = vsub.f32 1.5, %v139
    %v141 = vmul.f32 %v136, %v140
    %vm142 = vweird.f32 %v110
    %vm143 = vweird.f32 %v136
    %vm144 = vmor %vm142, %vm143
    %v145 = vsel %vm144, %v136, %v141
    %v146 = vrsqrt.pop %v111
    %v147 = vmul.f32 %v146, %v111
    %v148 = vmul.f32 %v147, %v146
    %v149 = vmul.f32 0.5, %v148
    %v150 = vsub.f32 1.5, %v149
    %v151 = vmul.f32 %v146, %v150
    %vm152 = vweird.f32 %v111
    %vm153 = vweird.f32 %v146
    %vm154 = vmor %vm152, %vm153
    %v155 = vsel %vm154, %v146, %v151
    %v156 = vrsqrt.pop %v112
    %v157 = vmul.f32 %v156, %v112
    %v158 = vmul.f32 %v157, %v156
    %v159 = vmul.f32 0.5, %v158
    %v160 = vsub.f32 1.5, %v159
    %v161 = vmul.f32 %v156, %v160
    %vm162 = vweird.f32 %v112
    %vm163 = vweird.f32 %v156
    %vm164 = vmor %vm162, %vm163
    %v165 = vsel %vm164, %v156, %v161
    %v166 = vrsqrt.pop %v113
    %v167 = vmul.f32 %v166, %v113
    %v168 = vmul.f32 %v167, %v166
    %v169 = vmul.f32 0.5, %v168
    %v170 = vsub.f32 1.5, %v169
    %v171 = vmul.f32 %v166, %v170
    %vm172 = vweird.f32 %v113
    %vm173 = vweird.f32 %v166
    %vm174 = vmor %vm172, %vm173
    %v175 = vsel %vm174, %v166, %v171
    %v176 = vrsqrt.pop %v114
    %v177 = vmul.f32 %v176, %v114
    %v178 = vmul.f32 %v177, %v176
    %v179 = vmul.f32 0.5, %v178
    %v180 = vsub.f32 1.5, %v179
    %v181 = vmul.f32 %v176, %v180
    %vm182 = vweird.f32 %v114
    %vm183 = vweird.f32 %v176
    %vm184 = vmor %vm182, %vm183
    %v185 = vsel %vm184, %v176, %v181
    %v186 = vrsqrt.pop %v115
    %v187 = vmul.f32 %v186, %v115
    %v188 = vmul.f32 %v187, %v186
    %v189 = vmul.f32 0.5, %v188
    %v190 = vsub.f32 1.5, %v189
    %v191 = vmul.f32 %v186, %v190
    %vm192 = vweird.f32 %v115
    %vm193 = vweird.f32 %v186
    %vm194 = vmor %vm192, %vm193
    %v195 = vsel %vm194, %v186, %v191
    %v196 = vmul.f32 %v61, %v125
    %v197 = vmul.f32 %v62, %v135
    %v198 = vmul.f32 %v63, %v145
    %v199 = vmul.f32 %v64, %v155
    %v200 = vmul.f32 %v65, %v165
    %v201 = vmul.f32 %v66, %v175
    %v202 = vmul.f32 %v67, %v185
    %v203 = vmul.f32 %v68, %v195
    %v204 = vpack.c.bf16 %v196, %v196
    %v205 = vpack.c.bf16 %v197, %v197
    %v206 = vpack.c.bf16 %v198, %v198
    %v207 = vpack.c.bf16 %v199, %v199
    %v208 = vpack.c.bf16 %v200, %v200
    %v209 = vpack.c.bf16 %v201, %v201
    %v210 = vpack.c.bf16 %v202, %v202
    %v211 = vpack.c.bf16 %v203, %v203
    %v212 = vld [vmem:[%s2] sm:$0x1]
    %v213 = vunpack.c.l.bf16 %v204
    %v214 = vunpack.c.l.bf16 %v205
    %v215 = vunpack.c.l.bf16 %v206
    %v216 = vunpack.c.l.bf16 %v207
    %v217 = vunpack.c.l.bf16 %v208
    %v218 = vunpack.c.l.bf16 %v209
    %v219 = vunpack.c.l.bf16 %v210
    %v220 = vunpack.c.l.bf16 %v211
    %v222 = vperm.slane %v212, 0
    %v224 = vmul.f32 %v213, %v222
    %v225 = vmul.f32 %v214, %v222
    %v226 = vmul.f32 %v215, %v222
    %v227 = vmul.f32 %v216, %v222
    %v228 = vmul.f32 %v217, %v222
    %v229 = vmul.f32 %v218, %v222
    %v230 = vmul.f32 %v219, %v222
    %v231 = vmul.f32 %v220, %v222
    %v232 = vpack.c.bf16 %v224, %v224
    %v233 = vpack.c.bf16 %v225, %v225
    %v234 = vpack.c.bf16 %v226, %v226
    %v235 = vpack.c.bf16 %v227, %v227
    %v236 = vpack.c.bf16 %v228, %v228
    %v237 = vpack.c.bf16 %v229, %v229
    %v238 = vpack.c.bf16 %v230, %v230
    %v239 = vpack.c.bf16 %v231, %v231
    %240 = vst [vmem:[#allocation7] sm:$0xf] %v232
    %241 = vst [vmem:[#allocation7 + $0x4] sm:$0xf] %v233
    %242 = vst [vmem:[#allocation7 + $0x8] sm:$0xf] %v234
    %243 = vst [vmem:[#allocation7 + $0xc] sm:$0xf] %v235
    %244 = vst [vmem:[#allocation7 + $0x10] sm:$0xf] %v236
    %245 = vst [vmem:[#allocation7 + $0x14] sm:$0xf] %v237
    %246 = vst [vmem:[#allocation7 + $0x18] sm:$0xf] %v238
    %247 = vst [vmem:[#allocation7 + $0x1c] sm:$0xf] %v239
    %v248 = vld [vmem:[#allocation5] sm:$0xf]
    %v249 = vld [vmem:[#allocation5 + $0x4] sm:$0xf]
    %v250 = vld [vmem:[#allocation5 + $0x8] sm:$0xf]
    %v251 = vld [vmem:[#allocation5 + $0xc] sm:$0xf]
    %v252 = vld [vmem:[#allocation5 + $0x10] sm:$0xf]
    %v253 = vld [vmem:[#allocation5 + $0x14] sm:$0xf]
    %v254 = vld [vmem:[#allocation5 + $0x18] sm:$0xf]
    %v255 = vld [vmem:[#allocation5 + $0x1c] sm:$0xf]
    %v256 = vunpack.c.l.bf16 %v248
    %v257 = vunpack.c.l.bf16 %v249
    %v258 = vunpack.c.l.bf16 %v250
    %v259 = vunpack.c.l.bf16 %v251
    %v260 = vunpack.c.l.bf16 %v252
    %v261 = vunpack.c.l.bf16 %v253
    %v262 = vunpack.c.l.bf16 %v254
    %v263 = vunpack.c.l.bf16 %v255
    %v264 = vmul.f32 %v256, %v256
    %v265 = vmul.f32 %v257, %v257
    %v266 = vmul.f32 %v258, %v258
    %v267 = vmul.f32 %v259, %v259
    %v268 = vmul.f32 %v260, %v260
    %v269 = vmul.f32 %v261, %v261
    %v270 = vmul.f32 %v262, %v262
    %v271 = vmul.f32 %v263, %v263
    %272 = vadd.xlane.f32.xlu0 %v264
    %v273 = vpop.xlane.xlu0 %272
    %274 = vadd.xlane.f32.xlu0 %v265
    %v275 = vpop.xlane.xlu0 %274
    %276 = vadd.xlane.f32.xlu0 %v266
    %v277 = vpop.xlane.xlu0 %276
    %278 = vadd.xlane.f32.xlu0 %v267
    %v279 = vpop.xlane.xlu0 %278
    %280 = vadd.xlane.f32.xlu0 %v268
    %v281 = vpop.xlane.xlu0 %280
    %282 = vadd.xlane.f32.xlu0 %v269
    %v283 = vpop.xlane.xlu0 %282
    %284 = vadd.xlane.f32.xlu0 %v270
    %v285 = vpop.xlane.xlu0 %284
    %286 = vadd.xlane.f32.xlu0 %v271
    %v287 = vpop.xlane.xlu0 %286
    %v288 = vmul.f32 %v273, %v99
    %v289 = vmul.f32 %v275, %v99
    %v290 = vmul.f32 %v277, %v99
    %v291 = vmul.f32 %v279, %v99
    %v292 = vmul.f32 %v281, %v99
    %v293 = vmul.f32 %v283, %v99
    %v294 = vmul.f32 %v285, %v99
    %v295 = vmul.f32 %v287, %v99
    %v296 = vadd.f32 %v288, 1e-06
    %v297 = vadd.f32 %v289, 1e-06
    %v298 = vadd.f32 %v290, 1e-06
    %v299 = vadd.f32 %v291, 1e-06
    %v300 = vadd.f32 %v292, 1e-06
    %v301 = vadd.f32 %v293, 1e-06
    %v302 = vadd.f32 %v294, 1e-06
    %v303 = vadd.f32 %v295, 1e-06
    %v304 = vrsqrt.pop %v296
    %v305 = vmul.f32 %v304, %v296
    %v306 = vmul.f32 %v305, %v304
    %v307 = vmul.f32 0.5, %v306
    %v308 = vsub.f32 1.5, %v307
    %v309 = vmul.f32 %v304, %v308
    %vm310 = vweird.f32 %v296
    %vm311 = vweird.f32 %v304
    %vm312 = vmor %vm310, %vm311
    %v313 = vsel %vm312, %v304, %v309
    %v314 = vrsqrt.pop %v297
    %v315 = vmul.f32 %v314, %v297
    %v316 = vmul.f32 %v315, %v314
    %v317 = vmul.f32 0.5, %v316
    %v318 = vsub.f32 1.5, %v317
    %v319 = vmul.f32 %v314, %v318
    %vm320 = vweird.f32 %v297
    %vm321 = vweird.f32 %v314
    %vm322 = vmor %vm320, %vm321
    %v323 = vsel %vm322, %v314, %v319
    %v324 = vrsqrt.pop %v298
    %v325 = vmul.f32 %v324, %v298
    %v326 = vmul.f32 %v325, %v324
    %v327 = vmul.f32 0.5, %v326
    %v328 = vsub.f32 1.5, %v327
    %v329 = vmul.f32 %v324, %v328
    %vm330 = vweird.f32 %v298
    %vm331 = vweird.f32 %v324
    %vm332 = vmor %vm330, %vm331
    %v333 = vsel %vm332, %v324, %v329
    %v334 = vrsqrt.pop %v299
    %v335 = vmul.f32 %v334, %v299
    %v336 = vmul.f32 %v335, %v334
    %v337 = vmul.f32 0.5, %v336
    %v338 = vsub.f32 1.5, %v337
    %v339 = vmul.f32 %v334, %v338
    %vm340 = vweird.f32 %v299
    %vm341 = vweird.f32 %v334
    %vm342 = vmor %vm340, %vm341
    %v343 = vsel %vm342, %v334, %v339
    %v344 = vrsqrt.pop %v300
    %v345 = vmul.f32 %v344, %v300
    %v346 = vmul.f32 %v345, %v344
    %v347 = vmul.f32 0.5, %v346
    %v348 = vsub.f32 1.5, %v347
    %v349 = vmul.f32 %v344, %v348
    %vm350 = vweird.f32 %v300
    %vm351 = vweird.f32 %v344
    %vm352 = vmor %vm350, %vm351
    %v353 = vsel %vm352, %v344, %v349
    %v354 = vrsqrt.pop %v301
    %v355 = vmul.f32 %v354, %v301
    %v356 = vmul.f32 %v355, %v354
    %v357 = vmul.f32 0.5, %v356
    %v358 = vsub.f32 1.5, %v357
    %v359 = vmul.f32 %v354, %v358
    %vm360 = vweird.f32 %v301
    %vm361 = vweird.f32 %v354
    %vm362 = vmor %vm360, %vm361
    %v363 = vsel %vm362, %v354, %v359
    %v364 = vrsqrt.pop %v302
    %v365 = vmul.f32 %v364, %v302
    %v366 = vmul.f32 %v365, %v364
    %v367 = vmul.f32 0.5, %v366
    %v368 = vsub.f32 1.5, %v367
    %v369 = vmul.f32 %v364, %v368
    %vm370 = vweird.f32 %v302
    %vm371 = vweird.f32 %v364
    %vm372 = vmor %vm370, %vm371
    %v373 = vsel %vm372, %v364, %v369
    %v374 = vrsqrt.pop %v303
    %v375 = vmul.f32 %v374, %v303
    %v376 = vmul.f32 %v375, %v374
    %v377 = vmul.f32 0.5, %v376
    %v378 = vsub.f32 1.5, %v377
    %v379 = vmul.f32 %v374, %v378
    %vm380 = vweird.f32 %v303
    %vm381 = vweird.f32 %v374
    %vm382 = vmor %vm380, %vm381
    %v383 = vsel %vm382, %v374, %v379
    %v384 = vmul.f32 %v256, %v313
    %v385 = vmul.f32 %v257, %v323
    %v386 = vmul.f32 %v258, %v333
    %v387 = vmul.f32 %v259, %v343
    %v388 = vmul.f32 %v260, %v353
    %v389 = vmul.f32 %v261, %v363
    %v390 = vmul.f32 %v262, %v373
    %v391 = vmul.f32 %v263, %v383
    %v392 = vpack.c.bf16 %v384, %v384
    %v393 = vpack.c.bf16 %v385, %v385
    %v394 = vpack.c.bf16 %v386, %v386
    %v395 = vpack.c.bf16 %v387, %v387
    %v396 = vpack.c.bf16 %v388, %v388
    %v397 = vpack.c.bf16 %v389, %v389
    %v398 = vpack.c.bf16 %v390, %v390
    %v399 = vpack.c.bf16 %v391, %v391
    %v400 = vld [vmem:[%s3] sm:$0x1]
    %v401 = vunpack.c.l.bf16 %v392
    %v402 = vunpack.c.l.bf16 %v393
    %v403 = vunpack.c.l.bf16 %v394
    %v404 = vunpack.c.l.bf16 %v395
    %v405 = vunpack.c.l.bf16 %v396
    %v406 = vunpack.c.l.bf16 %v397
    %v407 = vunpack.c.l.bf16 %v398
    %v408 = vunpack.c.l.bf16 %v399
    %v410 = vperm.slane %v400, 0
    %v412 = vmul.f32 %v401, %v410
    %v413 = vmul.f32 %v402, %v410
    %v414 = vmul.f32 %v403, %v410
    %v415 = vmul.f32 %v404, %v410
    %v416 = vmul.f32 %v405, %v410
    %v417 = vmul.f32 %v406, %v410
    %v418 = vmul.f32 %v407, %v410
    %v419 = vmul.f32 %v408, %v410
    %v420 = vpack.c.bf16 %v412, %v412
    %v421 = vpack.c.bf16 %v413, %v413
    %v422 = vpack.c.bf16 %v414, %v414
    %v423 = vpack.c.bf16 %v415, %v415
    %v424 = vpack.c.bf16 %v416, %v416
    %v425 = vpack.c.bf16 %v417, %v417
    %v426 = vpack.c.bf16 %v418, %v418
    %v427 = vpack.c.bf16 %v419, %v419
    %428 = vst [vmem:[#allocation8] sm:$0xf] %v420
    %429 = vst [vmem:[#allocation8 + $0x4] sm:$0xf] %v421
    %430 = vst [vmem:[#allocation8 + $0x8] sm:$0xf] %v422
    %431 = vst [vmem:[#allocation8 + $0xc] sm:$0xf] %v423
    %432 = vst [vmem:[#allocation8 + $0x10] sm:$0xf] %v424
    %433 = vst [vmem:[#allocation8 + $0x14] sm:$0xf] %v425
    %434 = vst [vmem:[#allocation8 + $0x18] sm:$0xf] %v426
    %435 = vst [vmem:[#allocation8 + $0x1c] sm:$0xf] %v427
    // Predicated region
    $region26: #{tpu_custom_call.1} parent=1 // pred_check
      _
    $region27: #{tpu_custom_call.1} parent=1 // pred_check_branch
      %437 = sbr.rel (0) target = $region29
    $region28: #{tpu_custom_call.1} parent=1 // pred_region
      %439 = vsyncadd [#allocation4], 0
      %s440 = sshll.u32 [#allocation7], 4
      %s441 = int_to_ptr.vmem [resolvable:$true] %s440
      %s442 = sshll.u32 %s4, 4
      %s443 = int_to_ptr.hbm [resolvable:$true] %s442
      %448 = dma.vmem_to_hbm [thread:$0]  %s441, 512, %s443, [#allocation4], 64, 64, 4
    $region29: #{tpu_custom_call.1} parent=1 // pred_fallthru
      _
    // Predicated region
    $region30: #{tpu_custom_call.1} parent=1 // pred_check
      _
    $region31: #{tpu_custom_call.1} parent=1 // pred_check_branch
      %450 = sbr.rel (0) target = $region33
    $region32: #{tpu_custom_call.1} parent=1 // pred_region
      %452 = vsyncadd [#allocation9], 0
      %s453 = sshll.u32 [#allocation8], 4
      %s454 = int_to_ptr.vmem [resolvable:$true] %s453
      %s455 = sshll.u32 %s5, 4
      %s456 = int_to_ptr.hbm [resolvable:$true] %s455
      %461 = dma.vmem_to_hbm [thread:$0]  %s454, 512, %s456, [#allocation9], 64, 64, 4
    $region33: #{tpu_custom_call.1} parent=1 // pred_fallthru
      _
    // Predicated region
    $region34: #{tpu_custom_call.1} parent=1 // pred_check
      _
    $region35: #{tpu_custom_call.1} parent=1 // pred_check_branch
      %463 = sbr.rel (0) target = $region37
    $region36: #{tpu_custom_call.1} parent=1 // pred_region
      %465 = dma.done [#allocation4], 512
    $region37: #{tpu_custom_call.1} parent=1 // pred_fallthru
      _
    // Predicated region
    $region38: #{tpu_custom_call.1} parent=1 // pred_check
      _
    $region39: #{tpu_custom_call.1} parent=1 // pred_check_branch
      %467 = sbr.rel (0) target = $region41
    $region40: #{tpu_custom_call.1} parent=1 // pred_region
      %469 = dma.done [#allocation9], 512
    $region41: #{tpu_custom_call.1} parent=1 // pred_fallthru
      _
    %470 = vsyncpa [#allocation3], 1
    %471 = vsyncpa [#allocation6], 1
    %472 = vsyncpa [#allocation4], 1
    %473 = vsyncpa [#allocation9], 1

</llo_original>
